<compile_context>
chip_gen: v7x
topology: tpu7x:2x2x1
jax: 0.10.0
libtpu: 0.0.40
codegen_flags: <defaults>
</compile_context>

<pallas_src>
import functools

import jax
import jax.numpy as jnp
from jax.experimental import pallas as pl
from jax.experimental.pallas import tpu as pltpu


def _round_up(a, b):
    return (a + b - 1) // b * b


# --------------------------------------------------------------------------
# Path A: fused single kernel for VMEM-resident inputs (one read of x, one launch)
# --------------------------------------------------------------------------
def _fused_kernel(x_ref, gamma_ref, beta_ref, o_ref, *, n_valid, fold, eps):
    x = x_ref[...].astype(jnp.float32)                  # [nf, fold*C] lane-dense
    cf = x.shape[-1]
    c = cf // fold

    s_f = jnp.sum(x, axis=0, keepdims=True)             # [1, fold*C]
    sq_f = jnp.sum(x * x, axis=0, keepdims=True)        # [1, fold*C]

    # Combine the `fold` channel replicas -> true per-channel stats [1, C].
    # (tiny cross-lane work on a single [1, 128] row; negligible)
    s = s_f[:, :c]
    sq = sq_f[:, :c]
    for r in range(1, fold):
        s = s + s_f[:, r * c:(r + 1) * c]
        sq = sq + sq_f[:, r * c:(r + 1) * c]

    inv_n = jnp.float32(1.0 / n_valid)
    mean = s * inv_n
    var = jnp.maximum(sq * inv_n - mean * mean, 0.0)     # guard cancellation
    scale = gamma_ref[...] * jax.lax.rsqrt(var + jnp.float32(eps))   # [1, C]
    shift = beta_ref[...] - mean * scale                              # [1, C]

    # Tile back to the folded lane layout and apply.
    scale_f = jnp.tile(scale, (1, fold))                 # [1, fold*C]
    shift_f = jnp.tile(shift, (1, fold))
    o_ref[...] = (x * scale_f + shift_f).astype(o_ref.dtype)


# --------------------------------------------------------------------------
# Path B: two-pass streaming version for large N
# --------------------------------------------------------------------------
def _stats_kernel(x_ref, sum_ref, sumsq_ref):
    """Accumulate per-(folded-)channel sum / sum-of-squares over N tiles."""
    @pl.when(pl.program_id(1) == 0)
    def _():
        sum_ref[...] = jnp.zeros_like(sum_ref)
        sumsq_ref[...] = jnp.zeros_like(sumsq_ref)

    x = x_ref[...].astype(jnp.float32)                           # [tile_nf, cf]
    sum_ref[...] += jnp.sum(x, axis=0, keepdims=True)[None]      # -> [1, 1, cf]
    sumsq_ref[...] += jnp.sum(x * x, axis=0, keepdims=True)[None]


def _normalize_kernel(x_ref, scale_ref, shift_ref, o_ref):
    """y = x * scale + shift on a lane-dense [tile_nf, cf] tile."""
    x = x_ref[...].astype(jnp.float32)
    o_ref[...] = (x * scale_ref[...] + shift_ref[...]).astype(o_ref.dtype)


# --------------------------------------------------------------------------
# Wrapper
# --------------------------------------------------------------------------
def batch_norm_pallas(x, gamma, beta, *, eps=1e-5, tile_rows=2048,
                      max_fused_bytes=2 << 20):
    """BatchNorm1d over [N, C] point features: stats over N, per-channel affine."""
    n, c = x.shape
    out_dtype = x.dtype

    gamma = jnp.asarray(gamma, jnp.float32).reshape(1, c)
    beta = jnp.asarray(beta, jnp.float32).reshape(1, c)

    # Fold channels into the lane dim so the last dim is 128-lane dense.
    fold = 128 // c if (c < 128 and 128 % c == 0) else 1
    cf = fold * c

    # ---------------- fused path (whole tensor resident in VMEM) ----------------
    if n * c * 4 <= max_fused_bytes:
        nf = _round_up(n, fold) // fold
        n_pad = nf * fold
        x_f = x if n_pad == n else jnp.pad(x, ((0, n_pad - n), (0, 0)))
        x_f = x_f.reshape(nf, cf)

        kern = functools.partial(_fused_kernel, n_valid=n, fold=fold, eps=eps)
        y_f = pl.pallas_call(
            kern,
            out_shape=jax.ShapeDtypeStruct((nf, cf), out_dtype),
        )(x_f, gamma, beta)
        return y_f.reshape(n_pad, c)[:n]

    # ---------------- two-pass streaming path ----------------
    nf_raw = _round_up(n, fold) // fold
    tile_nf = min(tile_rows, _round_up(nf_raw, 8))       # ~1 MiB tiles at 2048x128 f32
    # Split the reduction so v7x's 2 TensorCores both work; skip the split (and
    # its extra padding) when the whole thing is a single tile anyway.
    n_parts = 2 if nf_raw > tile_nf else 1
    nf = _round_up(nf_raw, tile_nf * n_parts)
    n_pad = nf * fold
    x_f = x if n_pad == n else jnp.pad(x, ((0, n_pad - n), (0, 0)))
    x_f = x_f.reshape(nf, cf)

    nt = nf // tile_nf
    nt_per_part = nt // n_parts

    # Pass 1: partial per-(folded-)channel sums / sums-of-squares.
    sum_p, sumsq_p = pl.pallas_call(
        _stats_kernel,
        out_shape=(
            jax.ShapeDtypeStruct((n_parts, 1, cf), jnp.float32),
            jax.ShapeDtypeStruct((n_parts, 1, cf), jnp.float32),
        ),
        grid=(n_parts, nt_per_part),
        in_specs=[pl.BlockSpec((tile_nf, cf),
                               lambda p, i: (p * nt_per_part + i, 0))],
        out_specs=(
            pl.BlockSpec((1, 1, cf), lambda p, i: (p, 0, 0)),
            pl.BlockSpec((1, 1, cf), lambda p, i: (p, 0, 0)),
        ),
        compiler_params=pltpu.CompilerParams(
            dimension_semantics=("parallel", "arbitrary")),
    )(x_f)

    # Tiny finalize (plain jnp on [n_parts, 1, cf]): combine partials + channel
    # replicas, precompute per-channel scale/shift, tile back to folded layout.
    s = jnp.sum(sum_p.reshape(n_parts * fold, c), axis=0, keepdims=True)      # [1, C]
    sq = jnp.sum(sumsq_p.reshape(n_parts * fold, c), axis=0, keepdims=True)   # [1, C]
    mean = s / jnp.float32(n)
    var = jnp.maximum(sq / jnp.float32(n) - mean * mean, 0.0)
    scale = gamma * jax.lax.rsqrt(var + jnp.float32(eps))
    shift = beta - mean * scale
    scale_f = jnp.tile(scale, (1, fold))                                      # [1, cf]
    shift_f = jnp.tile(shift, (1, fold))

    # Pass 2: streaming lane-dense normalize, y = x*scale + shift.
    y_f = pl.pallas_call(
        _normalize_kernel,
        out_shape=jax.ShapeDtypeStruct((nf, cf), out_dtype),
        grid=(nt,),
        in_specs=[
            pl.BlockSpec((tile_nf, cf), lambda i: (i, 0)),
            pl.BlockSpec((1, cf), lambda i: (0, 0)),
            pl.BlockSpec((1, cf), lambda i: (0, 0)),
        ],
        out_specs=pl.BlockSpec((tile_nf, cf), lambda i: (i, 0)),
        compiler_params=pltpu.CompilerParams(
            dimension_semantics=("parallel",)),
    )(x_f, scale_f, shift_f)
    return y_f.reshape(n_pad, c)[:n]


if __name__ == "__main__":
    key = jax.random.PRNGKey(0)
    N, C = 256, 32  # N points, C channels

    x = jax.random.normal(key, (N, C), dtype=jnp.float32)

    # Deterministic parameter init per the module: weight=1, bias=0.
    gamma = jnp.ones((1, C), dtype=jnp.float32)
    beta = jnp.zeros((1, C), dtype=jnp.float32)

    # Fused (VMEM-resident) path.
    y = jax.block_until_ready(batch_norm_pallas(x, gamma, beta))

    mean = jnp.mean(x, axis=0, keepdims=True)
    var = jnp.mean((x - mean) ** 2, axis=0, keepdims=True)  # biased
    y_ref = (x - mean) / jnp.sqrt(var + 1e-5) * gamma + beta
    assert y.shape == x.shape and y.dtype == x.dtype
    assert jnp.allclose(y, y_ref, atol=1e-4, rtol=1e-4)

    # Also exercise the two-pass streaming path with a ragged point count.
    x2 = jax.random.normal(jax.random.PRNGKey(1), (1000, C), dtype=jnp.float32)
    y2 = jax.block_until_ready(
        batch_norm_pallas(x2, gamma, beta, max_fused_bytes=0))
    m2 = jnp.mean(x2, axis=0, keepdims=True)
    v2 = jnp.mean((x2 - m2) ** 2, axis=0, keepdims=True)
    y2_ref = (x2 - m2) / jnp.sqrt(v2 + 1e-5) * gamma + beta
    assert y2.shape == x2.shape and y2.dtype == x2.dtype
    assert jnp.allclose(y2, y2_ref, atol=1e-4, rtol=1e-4)

    print("KERNEL_OK")
</pallas_src>

<mosaic_0001>
module attributes {stable_mosaic.version = 11 : i64} {
  func.func @_fused_kernel(%arg0: memref<64x128xf32, #tpu.memory_space<vmem>>, %arg1: memref<1x32xf32, #tpu.memory_space<vmem>>, %arg2: memref<1x32xf32, #tpu.memory_space<vmem>>, %arg3: memref<64x128xf32, #tpu.memory_space<vmem>>) attributes {dimension_semantics = [], scalar_prefetch = 0 : i64, scratch_operands = 0 : i64, tpu.core_type = #tpu.core_type<tc>} {
    %c0 = arith.constant 0 : index
    %c0_0 = arith.constant 0 : index
    %0 = vector.load %arg0[%c0, %c0_0] : memref<64x128xf32, #tpu.memory_space<vmem>>, vector<64x128xf32>
    %cst = arith.constant dense<0.000000e+00> : vector<128xf32>
    %1 = vector.multi_reduction <add>, %0, %cst [0] : vector<64x128xf32> to vector<128xf32>
    %2 = vector.shape_cast %1 : vector<128xf32> to vector<1x128xf32>
    %3 = arith.mulf %0, %0 : vector<64x128xf32>
    %cst_1 = arith.constant dense<0.000000e+00> : vector<128xf32>
    %4 = vector.multi_reduction <add>, %3, %cst_1 [0] : vector<64x128xf32> to vector<128xf32>
    %5 = vector.shape_cast %4 : vector<128xf32> to vector<1x128xf32>
    %6 = vector.extract_strided_slice %2 {offsets = [0, 0], sizes = [1, 32], strides = [1, 1]} : vector<1x128xf32> to vector<1x32xf32>
    %7 = vector.extract_strided_slice %5 {offsets = [0, 0], sizes = [1, 32], strides = [1, 1]} : vector<1x128xf32> to vector<1x32xf32>
    %8 = vector.extract_strided_slice %2 {offsets = [0, 32], sizes = [1, 32], strides = [1, 1]} : vector<1x128xf32> to vector<1x32xf32>
    %9 = arith.addf %6, %8 : vector<1x32xf32>
    %10 = vector.extract_strided_slice %5 {offsets = [0, 32], sizes = [1, 32], strides = [1, 1]} : vector<1x128xf32> to vector<1x32xf32>
    %11 = arith.addf %7, %10 : vector<1x32xf32>
    %12 = vector.extract_strided_slice %2 {offsets = [0, 64], sizes = [1, 32], strides = [1, 1]} : vector<1x128xf32> to vector<1x32xf32>
    %13 = arith.addf %9, %12 : vector<1x32xf32>
    %14 = vector.extract_strided_slice %5 {offsets = [0, 64], sizes = [1, 32], strides = [1, 1]} : vector<1x128xf32> to vector<1x32xf32>
    %15 = arith.addf %11, %14 : vector<1x32xf32>
    %16 = vector.extract_strided_slice %2 {offsets = [0, 96], sizes = [1, 32], strides = [1, 1]} : vector<1x128xf32> to vector<1x32xf32>
    %17 = arith.addf %13, %16 : vector<1x32xf32>
    %18 = vector.extract_strided_slice %5 {offsets = [0, 96], sizes = [1, 32], strides = [1, 1]} : vector<1x128xf32> to vector<1x32xf32>
    %19 = arith.addf %15, %18 : vector<1x32xf32>
    %cst_2 = arith.constant 3.906250e-03 : f32
    %20 = vector.broadcast %cst_2 : f32 to vector<1x32xf32>
    %21 = arith.mulf %17, %20 : vector<1x32xf32>
    %cst_3 = arith.constant 3.906250e-03 : f32
    %22 = vector.broadcast %cst_3 : f32 to vector<1x32xf32>
    %23 = arith.mulf %19, %22 : vector<1x32xf32>
    %24 = arith.mulf %21, %21 : vector<1x32xf32>
    %25 = arith.subf %23, %24 : vector<1x32xf32>
    %cst_4 = arith.constant 0.000000e+00 : f32
    %26 = vector.broadcast %cst_4 : f32 to vector<1x32xf32>
    %27 = arith.maximumf %25, %26 : vector<1x32xf32>
    %c0_5 = arith.constant 0 : index
    %c0_6 = arith.constant 0 : index
    %28 = vector.load %arg1[%c0_5, %c0_6] : memref<1x32xf32, #tpu.memory_space<vmem>>, vector<1x32xf32>
    %cst_7 = arith.constant 9.99999974E-6 : f32
    %29 = vector.broadcast %cst_7 : f32 to vector<1x32xf32>
    %30 = arith.addf %27, %29 : vector<1x32xf32>
    %31 = math.rsqrt %30 : vector<1x32xf32>
    %32 = arith.mulf %28, %31 : vector<1x32xf32>
    %c0_8 = arith.constant 0 : index
    %c0_9 = arith.constant 0 : index
    %33 = vector.load %arg2[%c0_8, %c0_9] : memref<1x32xf32, #tpu.memory_space<vmem>>, vector<1x32xf32>
    %34 = arith.mulf %21, %32 : vector<1x32xf32>
    %35 = arith.subf %33, %34 : vector<1x32xf32>
    %36 = tpu.concatenate %32, %32, %32, %32 in 1 : vector<1x32xf32>, vector<1x32xf32>, vector<1x32xf32>, vector<1x32xf32> -> vector<1x128xf32>
    %37 = tpu.concatenate %35, %35, %35, %35 in 1 : vector<1x32xf32>, vector<1x32xf32>, vector<1x32xf32>, vector<1x32xf32> -> vector<1x128xf32>
    %38 = vector.broadcast %36 : vector<1x128xf32> to vector<64x128xf32>
    %39 = arith.mulf %0, %38 : vector<64x128xf32>
    %40 = vector.broadcast %37 : vector<1x128xf32> to vector<64x128xf32>
    %41 = arith.addf %39, %40 : vector<64x128xf32>
    %c0_10 = arith.constant 0 : index
    %c0_11 = arith.constant 0 : index
    %42 = vector.load %arg3[%c0_10, %c0_11] : memref<64x128xf32, #tpu.memory_space<vmem>>, vector<64x128xf32>
    tpu.vector_store %arg3[%c0_10, %c0_11], %41 {strides = array<i32>} : memref<64x128xf32, #tpu.memory_space<vmem>>, vector<64x128xf32>,
    return
  }
}

</mosaic_0001>

<llo_original>
// kernel: tpu_custom_call.1
$region0: #{tpu_custom_call.1}
  #allocation0 [shape = 'u32[]', space=smem, size = 0x4, offset = 0x4, fixed_abs, tag = 'smem constant byte address 0x4 - core index']
  #allocation1 [shape = 'u32[144,128]{1,0:T(1,128)}', space=vmem, size = 0x12000, scoped, tag = 'internal scratch']
  %s0 = inlined_call_operand.hbm [shape: f32[64,128], index: 0, kind: input, shape index: {}]
  %s1 = inlined_call_operand.vmem [shape: f32[1,32], index: 1, kind: input, shape index: {}]
  %s2 = inlined_call_operand.vmem [shape: f32[1,32], index: 2, kind: input, shape index: {}]
  %s3 = inlined_call_operand.hbm [shape: f32[64,128], index: 3, kind: output, shape index: {}]
  %s4 = sld [smem:[#allocation0]]
  $region26: #{tpu_custom_call.1} parent=0
    _
  %s6 = ssub.s32 1, %s4
  %s7 = scalar_select 0, %s6, %s4
  $region1: #{tpu_custom_call.1} parent=0
    #allocation2 [shape = 'u8[32768]{0}', space=vmem, size = 0x8000, scoped, tag = 'input window, operand 0, single buffered']
    #allocation3 [shape = 's32[1]{0}', space=sflag, size = 0x4, scoped, tag = 'scoped memory for tpu_custom_call.1']
    #allocation4 [shape = 's32[1]{0}', space=sflag, size = 0x4, scoped, tag = 'scoped memory for tpu_custom_call.1']
    #allocation5 [shape = 'u8[32768]{0}', space=vmem, size = 0x8000, scoped, tag = 'output window, operand 0, single buffered']
    %8 = vsyncpa [#allocation3], 0
    %9 = vsyncpa [#allocation4], 0
    // Predicated region
    $region2: #{tpu_custom_call.1} parent=1 // pred_check
      _
    $region3: #{tpu_custom_call.1} parent=1 // pred_check_branch
      %11 = sbr.rel (0) target = $region5
    $region4: #{tpu_custom_call.1} parent=1 // pred_region
      %s13 = ssub.s32 1024, 1024
      %14 = vsyncadd [#allocation3], %s13
      %s15 = sshll.u32 [#allocation2], 4
      %s16 = int_to_ptr.vmem [resolvable:$true] %s15
      %21 = dma.hbm_to_vmem [thread:$0]  %s0, 1024, %s16, [#allocation3], 128, 128, 8
    $region5: #{tpu_custom_call.1} parent=1 // pred_fallthru
      _
    // Predicated region
    $region6: #{tpu_custom_call.1} parent=1 // pred_check
      _
    $region7: #{tpu_custom_call.1} parent=1 // pred_check_branch
      %23 = sbr.rel (0) target = $region9
    $region8: #{tpu_custom_call.1} parent=1 // pred_region
      _
    $region9: #{tpu_custom_call.1} parent=1 // pred_fallthru
      _
    // Predicated region
    $region10: #{tpu_custom_call.1} parent=1 // pred_check
      _
    $region11: #{tpu_custom_call.1} parent=1 // pred_check_branch
      %25 = sbr.rel (0) target = $region13
    $region12: #{tpu_custom_call.1} parent=1 // pred_region
      _
    $region13: #{tpu_custom_call.1} parent=1 // pred_fallthru
      _
    // Predicated region
    $region14: #{tpu_custom_call.1} parent=1 // pred_check
      _
    $region15: #{tpu_custom_call.1} parent=1 // pred_check_branch
      %27 = sbr.rel (0) target = $region17
    $region16: #{tpu_custom_call.1} parent=1 // pred_region
      %28 = dma.done [#allocation3], 1024
    $region17: #{tpu_custom_call.1} parent=1 // pred_fallthru
      _
    %v29 = vld [vmem:[#allocation2] sm:$0xff]
    %v30 = vld [vmem:[#allocation2 + $0x8] sm:$0xff]
    %v31 = vld [vmem:[#allocation2 + $0x10] sm:$0xff]
    %v32 = vld [vmem:[#allocation2 + $0x18] sm:$0xff]
    %v33 = vld [vmem:[#allocation2 + $0x20] sm:$0xff]
    %v34 = vld [vmem:[#allocation2 + $0x28] sm:$0xff]
    %v35 = vld [vmem:[#allocation2 + $0x30] sm:$0xff]
    %v36 = vld [vmem:[#allocation2 + $0x38] sm:$0xff]
    %v37 = vadd.f32 %v29, %v30
    %v38 = vadd.f32 %v37, %v31
    %v39 = vadd.f32 %v38, %v32
    %v40 = vadd.f32 %v39, %v33
    %v41 = vadd.f32 %v40, %v34
    %v42 = vadd.f32 %v41, %v35
    %v43 = vadd.f32 %v42, %v36
    %v44 = vrot.slane %v43, 4
    %v45 = vadd.f32 %v43, %v44
    %v46 = vrot.slane %v45, 2
    %v47 = vadd.f32 %v45, %v46
    %v48 = vrot.slane %v47, 1
    %v49 = vadd.f32 %v47, %v48
    %v50 = vmul.f32 %v29, %v29
    %v51 = vmul.f32 %v30, %v30
    %v52 = vmul.f32 %v31, %v31
    %v53 = vmul.f32 %v32, %v32
    %v54 = vmul.f32 %v33, %v33
    %v55 = vmul.f32 %v34, %v34
    %v56 = vmul.f32 %v35, %v35
    %v57 = vmul.f32 %v36, %v36
    %v58 = vadd.f32 %v50, %v51
    %v59 = vadd.f32 %v58, %v52
    %v60 = vadd.f32 %v59, %v53
    %v61 = vadd.f32 %v60, %v54
    %v62 = vadd.f32 %v61, %v55
    %v63 = vadd.f32 %v62, %v56
    %v64 = vadd.f32 %v63, %v57
    %v65 = vrot.slane %v64, 4
    %v66 = vadd.f32 %v64, %v65
    %v67 = vrot.slane %v66, 2
    %v68 = vadd.f32 %v66, %v67
    %v69 = vrot.slane %v68, 1
    %v70 = vadd.f32 %v68, %v69
    %72 = vrot.lane.b32.xlu0 %v49, 96
    %v73 = vpop.permute.xlu0 %72
    %v75 = vadd.f32 %v49, %v73
    %77 = vrot.lane.b32.xlu0 %v70, 96
    %v78 = vpop.permute.xlu0 %77
    %v80 = vadd.f32 %v70, %v78
    %81 = vrot.lane.b32.xlu0 %v49, 64
    %v82 = vpop.permute.xlu0 %81
    %v84 = vadd.f32 %v75, %v82
    %85 = vrot.lane.b32.xlu0 %v70, 64
    %v86 = vpop.permute.xlu0 %85
    %v88 = vadd.f32 %v80, %v86
    %89 = vrot.lane.b32.xlu0 %v49, 32
    %v90 = vpop.permute.xlu0 %89
    %v92 = vadd.f32 %v84, %v90
    %93 = vrot.lane.b32.xlu0 %v70, 32
    %v94 = vpop.permute.xlu0 %93
    %v96 = vadd.f32 %v88, %v94
    %v97 = vmul.f32 %v92, 0.00390625
    %v98 = vmul.f32 %v96, 0.00390625
    %v99 = vmul.f32 %v97, %v97
    %v100 = vsub.f32 %v98, %v99
    %v101 = vmax.f32 %v100, 0.0
    %v102 = vld [vmem:[%s1] sm:$0x1]
    %v103 = vadd.f32 %v101, 1e-05
    %v104 = vrsqrt.pop %v103
    %v105 = vmul.f32 %v102, %v104
    %v106 = vld [vmem:[%s2] sm:$0x1]
    %v107 = vmul.f32 %v97, %v105
    %v108 = vsub.f32 %v106, %v107
    %v110 = vlaneseq
    %v111 = vshrl.u32 %v110, 7
    %v112 = vsub.s32 0, %v111
    %v113 = vrot.slane %v105, %v112
    %114 = vrot.lane.b32.xlu0 %v113, 32
    %v115 = vpop.permute.xlu0 %114
    %117 = vrot.lane.b32.xlu0 %v113, 64
    %v118 = vpop.permute.xlu0 %117
    %120 = vrot.lane.b32.xlu0 %v113, 96
    %v121 = vpop.permute.xlu0 %120
    %vm123 = vcmask 261120
    %v124 = vsel %vm123, %v105, %v115
    %vm125 = vcmask 523264
    %v126 = vsel %vm125, %v124, %v118
    %vm127 = vcmask 785408
    %v128 = vsel %vm127, %v126, %v121
    %v130 = vlaneseq
    %v131 = vshrl.u32 %v130, 7
    %v132 = vsub.s32 0, %v131
    %v133 = vrot.slane %v108, %v132
    %134 = vrot.lane.b32.xlu0 %v133, 32
    %v135 = vpop.permute.xlu0 %134
    %137 = vrot.lane.b32.xlu0 %v133, 64
    %v138 = vpop.permute.xlu0 %137
    %140 = vrot.lane.b32.xlu0 %v133, 96
    %v141 = vpop.permute.xlu0 %140
    %v143 = vsel %vm123, %v108, %v135
    %v144 = vsel %vm125, %v143, %v138
    %v145 = vsel %vm127, %v144, %v141
    %v146 = vlaneseq
    %v147 = vshrl.u32 %v146, 7
    %v148 = vsub.s32 0, %v147
    %v149 = vrot.slane %v128, %v148
    %v150 = vmul.f32 %v29, %v149
    %v151 = vmul.f32 %v30, %v149
    %v152 = vmul.f32 %v31, %v149
    %v153 = vmul.f32 %v32, %v149
    %v154 = vmul.f32 %v33, %v149
    %v155 = vmul.f32 %v34, %v149
    %v156 = vmul.f32 %v35, %v149
    %v157 = vmul.f32 %v36, %v149
    %v158 = vlaneseq
    %v159 = vshrl.u32 %v158, 7
    %v160 = vsub.s32 0, %v159
    %v161 = vrot.slane %v145, %v160
    %v162 = vadd.f32 %v150, %v161
    %v163 = vadd.f32 %v151, %v161
    %v164 = vadd.f32 %v152, %v161
    %v165 = vadd.f32 %v153, %v161
    %v166 = vadd.f32 %v154, %v161
    %v167 = vadd.f32 %v155, %v161
    %v168 = vadd.f32 %v156, %v161
    %v169 = vadd.f32 %v157, %v161
    %170 = vst [vmem:[#allocation5] sm:$0xff] %v162
    %171 = vst [vmem:[#allocation5 + $0x8] sm:$0xff] %v163
    %172 = vst [vmem:[#allocation5 + $0x10] sm:$0xff] %v164
    %173 = vst [vmem:[#allocation5 + $0x18] sm:$0xff] %v165
    %174 = vst [vmem:[#allocation5 + $0x20] sm:$0xff] %v166
    %175 = vst [vmem:[#allocation5 + $0x28] sm:$0xff] %v167
    %176 = vst [vmem:[#allocation5 + $0x30] sm:$0xff] %v168
    %177 = vst [vmem:[#allocation5 + $0x38] sm:$0xff] %v169
    // Predicated region
    $region18: #{tpu_custom_call.1} parent=1 // pred_check
      _
    $region19: #{tpu_custom_call.1} parent=1 // pred_check_branch
      %179 = sbr.rel (0) target = $region21
    $region20: #{tpu_custom_call.1} parent=1 // pred_region
      %s181 = ssub.s32 1024, 1024
      %182 = vsyncadd [#allocation4], %s181
      %s183 = sshll.u32 [#allocation5], 4
      %s184 = int_to_ptr.vmem [resolvable:$true] %s183
      %189 = dma.vmem_to_hbm [thread:$0]  %s184, 1024, %s3, [#allocation4], 128, 128, 8
    $region21: #{tpu_custom_call.1} parent=1 // pred_fallthru
      _
    // Predicated region
    $region22: #{tpu_custom_call.1} parent=1 // pred_check
      _
    $region23: #{tpu_custom_call.1} parent=1 // pred_check_branch
      %191 = sbr.rel (0) target = $region25
    $region24: #{tpu_custom_call.1} parent=1 // pred_region
      %192 = dma.done [#allocation4], 1024
    $region25: #{tpu_custom_call.1} parent=1 // pred_fallthru
      _
    %193 = vsyncpa [#allocation3], 1
    %194 = vsyncpa [#allocation4], 1

</llo_original>
